<compile_context>
chip_gen: v6e
topology: v6e:2x2x1
jax: 0.10.0
libtpu: 0.0.40
codegen_flags: <defaults>
</compile_context>

<pallas_src>
import functools

import jax
import jax.numpy as jnp
from jax.experimental import pallas as pl
from jax.experimental.pallas import tpu as pltpu

PAD = 128          # lane-padded feature width for layers 1..8
N_LAYERS = 8
DIMS_MID = [5, 10, 10, 10, 10, 10, 5]   # hidden widths between input and output


def _round_up(n, m):
    return ((n + m - 1) // m) * m


def _cdiv(a, b):
    return (a + b - 1) // b


def mlp_kernel(x_ref, w_ref, b_ref, o_ref, *, in_size):
    """Full 8-layer MLP on one (TB, in_size) activation tile.

    x_ref: (TB, in_size)  f32 raw activations (no lane padding)
    w_ref: (8, 128, 128)  bf16 stacked, pre-transposed (in, out) weights (resident)
    b_ref: (8, 1, 128)    f32 stacked biases (resident)
    o_ref: (TB, 128)      bf16 output (live lanes: [:out_size])
    """
    # Layer 0: K = in_size matmul against the live rows of w[0] (static slice,
    # so no stale padded lanes are ever contracted).
    x = x_ref[...].astype(jnp.bfloat16)
    w0 = w_ref[0, :in_size, :]                                  # (in_size, 128)
    acc = jnp.dot(x, w0, preferred_element_type=jnp.float32) + b_ref[0]
    h = jnp.maximum(acc, 0.0).astype(jnp.bfloat16)

    # Layers 1..7: static Python unroll, 7 more (TB,128)@(128,128) MXU tiles.
    for layer in range(1, N_LAYERS):
        acc = jnp.dot(h, w_ref[layer],
                      preferred_element_type=jnp.float32) + b_ref[layer]
        if layer < N_LAYERS - 1:          # ReLU on all but the last layer
            h = jnp.maximum(acc, 0.0).astype(jnp.bfloat16)
        else:
            o_ref[...] = acc.astype(o_ref.dtype)   # f32 acc -> bf16 store


@functools.partial(jax.jit, static_argnames=("out_size", "block_rows"))
def deep_model_forward(x, w_stack, b_stack, out_size, block_rows=4096):
    """x: (B, input_size) float32 -> (B, out_size) float32."""
    B, in_size = x.shape

    # Equal-split batch tiling: per-tile padding is bounded to <8 rows, and the
    # grid is kept at >=4 steps for large batches (v7x: both TensorCores get
    # work and each still has >=2 steps to double-buffer).
    n_tiles = _cdiv(B, block_rows)
    if n_tiles < 4 and B >= 1024:
        n_tiles = 4
    tb = _round_up(_cdiv(B, n_tiles), 8)
    B_pad = n_tiles * tb

    # Row-pad only (no lane pad, no cast): the kernel consumes raw f32 rows.
    x_pad = jnp.pad(x, ((0, B_pad - B), (0, 0)))

    cost = pl.CostEstimate(
        flops=2 * N_LAYERS * B_pad * PAD * PAD,
        transcendentals=0,
        bytes_accessed=(B_pad * in_size * 4          # x in (f32)
                        + B_pad * PAD * 2            # out (bf16)
                        + N_LAYERS * PAD * PAD * 2   # weights (bf16)
                        + N_LAYERS * PAD * 4),       # biases (f32)
    )

    out_pad = pl.pallas_call(
        functools.partial(mlp_kernel, in_size=in_size),
        out_shape=jax.ShapeDtypeStruct((B_pad, PAD), jnp.bfloat16),
        grid=(n_tiles,),
        in_specs=[
            # activations: tiled, auto double-buffered across the batch grid
            pl.BlockSpec((tb, in_size), lambda i: (i, 0)),
            # weights / biases: VMEM-resident, constant index_map -> 1 buffer
            pl.BlockSpec((N_LAYERS, PAD, PAD), lambda i: (0, 0, 0),
                         pipeline_mode=pl.Buffered(1)),
            pl.BlockSpec((N_LAYERS, 1, PAD), lambda i: (0, 0, 0),
                         pipeline_mode=pl.Buffered(1)),
        ],
        out_specs=pl.BlockSpec((tb, PAD), lambda i: (i, 0)),
        compiler_params=pltpu.CompilerParams(
            dimension_semantics=("parallel",)),
        cost_estimate=cost,
    )(x_pad, w_stack, b_stack)

    # Caller expects exact (B, out_size) f32; kernel store stays 128-lane dense.
    return out_pad[:B, :out_size].astype(jnp.float32)


def init_params(key, input_size, output_size):
    """Init mirroring nn.Linear defaults (uniform +/- 1/sqrt(fan_in)).

    Returns:
      w_stack: (8, 128, 128) bf16  layer i's (in, out) weight, zero-padded
      b_stack: (8, 1, 128)   f32   layer i's bias, zero-padded (padding MUST be 0)
      layers : list of (w_f32, b_f32) unpadded params for the pure-JAX reference
    """
    dims = [input_size] + DIMS_MID + [output_size]
    w_stack = jnp.zeros((N_LAYERS, PAD, PAD), jnp.float32)
    b_stack = jnp.zeros((N_LAYERS, 1, PAD), jnp.float32)
    layers = []
    keys = jax.random.split(key, 2 * N_LAYERS)
    for i in range(N_LAYERS):
        fan_in, fan_out = dims[i], dims[i + 1]
        bound = 1.0 / (fan_in ** 0.5)
        # PyTorch stores weight as (out, in); we store the transpose (in, out).
        w = jax.random.uniform(keys[2 * i], (fan_in, fan_out),
                               jnp.float32, -bound, bound)
        b = jax.random.uniform(keys[2 * i + 1], (fan_out,),
                               jnp.float32, -bound, bound)
        w_stack = w_stack.at[i, :fan_in, :fan_out].set(w)
        b_stack = b_stack.at[i, 0, :fan_out].set(b)
        layers.append((w, b))
    return w_stack.astype(jnp.bfloat16), b_stack, layers


def reference_forward(x, layers):
    """Pure-JAX f32 reference of the PyTorch forward for validation."""
    h = x
    for i, (w, b) in enumerate(layers):
        h = h @ w + b
        if i < N_LAYERS - 1:
            h = jnp.maximum(h, 0.0)
    return h


if __name__ == "__main__":
    input_size, output_size, batch = 16, 3, 4

    key = jax.random.PRNGKey(0)
    key_x, key_p, key_big = jax.random.split(key, 3)
    w_stack, b_stack, layers = init_params(key_p, input_size, output_size)

    # Small-shape test (single grid step).
    x = jax.random.normal(key_x, (batch, input_size), jnp.float32)
    out = jax.block_until_ready(
        deep_model_forward(x, w_stack, b_stack, output_size))
    ref = reference_forward(x, layers)
    assert out.shape == (batch, output_size)
    # bf16 weights/activations/output with f32 accumulation -> loose tolerance.
    assert jnp.allclose(out, ref, atol=3e-2, rtol=3e-2), "mismatch vs reference (small)"

    # Larger batch exercises the multi-step pipelined "parallel" grid
    # (>=4 tiles for both v7x TensorCores) and equal-split ragged padding.
    big_batch = 2050
    x_big = jax.random.normal(key_big, (big_batch, input_size), jnp.float32)
    out_big = jax.block_until_ready(
        deep_model_forward(x_big, w_stack, b_stack, output_size))
    ref_big = reference_forward(x_big, layers)
    assert out_big.shape == (big_batch, output_size)
    assert jnp.allclose(out_big, ref_big, atol=3e-2, rtol=3e-2), "mismatch vs reference (big)"

    print("KERNEL_OK")
</pallas_src>

<mosaic_0001>
module attributes {stable_mosaic.version = 11 : i64} {
  func.func @mlp_kernel(%arg0: i32, %arg1: memref<8x16xf32, #tpu.memory_space<vmem>>, %arg2: memref<8x128x128xbf16, #tpu.memory_space<vmem>>, %arg3: memref<8x1x128xf32, #tpu.memory_space<vmem>>, %arg4: memref<8x128xbf16, #tpu.memory_space<vmem>>) attributes {dimension_semantics = [#tpu.dimension_semantics<parallel>], iteration_bounds = array<i64: 1>, scalar_prefetch = 0 : i64, scratch_operands = 0 : i64, tpu.core_type = #tpu.core_type<tc>, window_params = [{transform_indices = @transform_0, window_bounds = array<i64: 8, 16>}, {pipeline_mode = #tpu.pipeline_mode<synchronous>, transform_indices = @transform_1, window_bounds = array<i64: 8, 128, 128>}, {pipeline_mode = #tpu.pipeline_mode<synchronous>, transform_indices = @transform_2, window_bounds = array<i64: 8, 1, 128>}, {transform_indices = @transform_3, window_bounds = array<i64: 8, 128>}]} {
    %c0 = arith.constant 0 : index
    %c0_0 = arith.constant 0 : index
    %0 = vector.load %arg1[%c0, %c0_0] : memref<8x16xf32, #tpu.memory_space<vmem>>, vector<8x16xf32>
    %1 = arith.truncf %0 : vector<8x16xf32> to vector<8x16xbf16>
    %c0_1 = arith.constant 0 : index
    %c0_2 = arith.constant 0 : index
    %c0_3 = arith.constant 0 : index
    %2 = vector.load %arg2[%c0_1, %c0_2, %c0_3] : memref<8x128x128xbf16, #tpu.memory_space<vmem>>, vector<1x16x128xbf16>
    %3 = vector.shape_cast %2 : vector<1x16x128xbf16> to vector<16x128xbf16>
    %cst = arith.constant dense<0.000000e+00> : vector<8x128xf32>
    %4 = tpu.matmul %1, %3, %cst {dimension_numbers = #tpu.dot_dimension_numbers<[1], [0], [0], [1], [0, 0, 1, 1], [], []>} : vector<8x16xbf16>, vector<16x128xbf16>, vector<8x128xf32> -> vector<8x128xf32>
    %c0_4 = arith.constant 0 : index
    %c0_5 = arith.constant 0 : index
    %c0_6 = arith.constant 0 : index
    %5 = vector.load %arg3[%c0_4, %c0_5, %c0_6] : memref<8x1x128xf32, #tpu.memory_space<vmem>>, vector<1x1x128xf32>
    %6 = vector.shape_cast %5 : vector<1x1x128xf32> to vector<1x128xf32>
    %7 = vector.broadcast %6 : vector<1x128xf32> to vector<8x128xf32>
    %8 = arith.addf %4, %7 : vector<8x128xf32>
    %cst_7 = arith.constant 0.000000e+00 : f32
    %9 = vector.broadcast %cst_7 : f32 to vector<8x128xf32>
    %10 = arith.maximumf %8, %9 : vector<8x128xf32>
    %11 = arith.truncf %10 : vector<8x128xf32> to vector<8x128xbf16>
    %c1 = arith.constant 1 : index
    %c0_8 = arith.constant 0 : index
    %c0_9 = arith.constant 0 : index
    %12 = vector.load %arg2[%c1, %c0_8, %c0_9] : memref<8x128x128xbf16, #tpu.memory_space<vmem>>, vector<1x128x128xbf16>
    %13 = vector.shape_cast %12 : vector<1x128x128xbf16> to vector<128x128xbf16>
    %cst_10 = arith.constant dense<0.000000e+00> : vector<8x128xf32>
    %14 = tpu.matmul %11, %13, %cst_10 {dimension_numbers = #tpu.dot_dimension_numbers<[1], [0], [0], [1], [0, 0, 1, 1], [], []>} : vector<8x128xbf16>, vector<128x128xbf16>, vector<8x128xf32> -> vector<8x128xf32>
    %c1_11 = arith.constant 1 : index
    %c0_12 = arith.constant 0 : index
    %c0_13 = arith.constant 0 : index
    %15 = vector.load %arg3[%c1_11, %c0_12, %c0_13] : memref<8x1x128xf32, #tpu.memory_space<vmem>>, vector<1x1x128xf32>
    %16 = vector.shape_cast %15 : vector<1x1x128xf32> to vector<1x128xf32>
    %17 = vector.broadcast %16 : vector<1x128xf32> to vector<8x128xf32>
    %18 = arith.addf %14, %17 : vector<8x128xf32>
    %cst_14 = arith.constant 0.000000e+00 : f32
    %19 = vector.broadcast %cst_14 : f32 to vector<8x128xf32>
    %20 = arith.maximumf %18, %19 : vector<8x128xf32>
    %21 = arith.truncf %20 : vector<8x128xf32> to vector<8x128xbf16>
    %c2 = arith.constant 2 : index
    %c0_15 = arith.constant 0 : index
    %c0_16 = arith.constant 0 : index
    %22 = vector.load %arg2[%c2, %c0_15, %c0_16] : memref<8x128x128xbf16, #tpu.memory_space<vmem>>, vector<1x128x128xbf16>
    %23 = vector.shape_cast %22 : vector<1x128x128xbf16> to vector<128x128xbf16>
    %cst_17 = arith.constant dense<0.000000e+00> : vector<8x128xf32>
    %24 = tpu.matmul %21, %23, %cst_17 {dimension_numbers = #tpu.dot_dimension_numbers<[1], [0], [0], [1], [0, 0, 1, 1], [], []>} : vector<8x128xbf16>, vector<128x128xbf16>, vector<8x128xf32> -> vector<8x128xf32>
    %c2_18 = arith.constant 2 : index
    %c0_19 = arith.constant 0 : index
    %c0_20 = arith.constant 0 : index
    %25 = vector.load %arg3[%c2_18, %c0_19, %c0_20] : memref<8x1x128xf32, #tpu.memory_space<vmem>>, vector<1x1x128xf32>
    %26 = vector.shape_cast %25 : vector<1x1x128xf32> to vector<1x128xf32>
    %27 = vector.broadcast %26 : vector<1x128xf32> to vector<8x128xf32>
    %28 = arith.addf %24, %27 : vector<8x128xf32>
    %cst_21 = arith.constant 0.000000e+00 : f32
    %29 = vector.broadcast %cst_21 : f32 to vector<8x128xf32>
    %30 = arith.maximumf %28, %29 : vector<8x128xf32>
    %31 = arith.truncf %30 : vector<8x128xf32> to vector<8x128xbf16>
    %c3 = arith.constant 3 : index
    %c0_22 = arith.constant 0 : index
    %c0_23 = arith.constant 0 : index
    %32 = vector.load %arg2[%c3, %c0_22, %c0_23] : memref<8x128x128xbf16, #tpu.memory_space<vmem>>, vector<1x128x128xbf16>
    %33 = vector.shape_cast %32 : vector<1x128x128xbf16> to vector<128x128xbf16>
    %cst_24 = arith.constant dense<0.000000e+00> : vector<8x128xf32>
    %34 = tpu.matmul %31, %33, %cst_24 {dimension_numbers = #tpu.dot_dimension_numbers<[1], [0], [0], [1], [0, 0, 1, 1], [], []>} : vector<8x128xbf16>, vector<128x128xbf16>, vector<8x128xf32> -> vector<8x128xf32>
    %c3_25 = arith.constant 3 : index
    %c0_26 = arith.constant 0 : index
    %c0_27 = arith.constant 0 : index
    %35 = vector.load %arg3[%c3_25, %c0_26, %c0_27] : memref<8x1x128xf32, #tpu.memory_space<vmem>>, vector<1x1x128xf32>
    %36 = vector.shape_cast %35 : vector<1x1x128xf32> to vector<1x128xf32>
    %37 = vector.broadcast %36 : vector<1x128xf32> to vector<8x128xf32>
    %38 = arith.addf %34, %37 : vector<8x128xf32>
    %cst_28 = arith.constant 0.000000e+00 : f32
    %39 = vector.broadcast %cst_28 : f32 to vector<8x128xf32>
    %40 = arith.maximumf %38, %39 : vector<8x128xf32>
    %41 = arith.truncf %40 : vector<8x128xf32> to vector<8x128xbf16>
    %c4 = arith.constant 4 : index
    %c0_29 = arith.constant 0 : index
    %c0_30 = arith.constant 0 : index
    %42 = vector.load %arg2[%c4, %c0_29, %c0_30] : memref<8x128x128xbf16, #tpu.memory_space<vmem>>, vector<1x128x128xbf16>
    %43 = vector.shape_cast %42 : vector<1x128x128xbf16> to vector<128x128xbf16>
    %cst_31 = arith.constant dense<0.000000e+00> : vector<8x128xf32>
    %44 = tpu.matmul %41, %43, %cst_31 {dimension_numbers = #tpu.dot_dimension_numbers<[1], [0], [0], [1], [0, 0, 1, 1], [], []>} : vector<8x128xbf16>, vector<128x128xbf16>, vector<8x128xf32> -> vector<8x128xf32>
    %c4_32 = arith.constant 4 : index
    %c0_33 = arith.constant 0 : index
    %c0_34 = arith.constant 0 : index
    %45 = vector.load %arg3[%c4_32, %c0_33, %c0_34] : memref<8x1x128xf32, #tpu.memory_space<vmem>>, vector<1x1x128xf32>
    %46 = vector.shape_cast %45 : vector<1x1x128xf32> to vector<1x128xf32>
    %47 = vector.broadcast %46 : vector<1x128xf32> to vector<8x128xf32>
    %48 = arith.addf %44, %47 : vector<8x128xf32>
    %cst_35 = arith.constant 0.000000e+00 : f32
    %49 = vector.broadcast %cst_35 : f32 to vector<8x128xf32>
    %50 = arith.maximumf %48, %49 : vector<8x128xf32>
    %51 = arith.truncf %50 : vector<8x128xf32> to vector<8x128xbf16>
    %c5 = arith.constant 5 : index
    %c0_36 = arith.constant 0 : index
    %c0_37 = arith.constant 0 : index
    %52 = vector.load %arg2[%c5, %c0_36, %c0_37] : memref<8x128x128xbf16, #tpu.memory_space<vmem>>, vector<1x128x128xbf16>
    %53 = vector.shape_cast %52 : vector<1x128x128xbf16> to vector<128x128xbf16>
    %cst_38 = arith.constant dense<0.000000e+00> : vector<8x128xf32>
    %54 = tpu.matmul %51, %53, %cst_38 {dimension_numbers = #tpu.dot_dimension_numbers<[1], [0], [0], [1], [0, 0, 1, 1], [], []>} : vector<8x128xbf16>, vector<128x128xbf16>, vector<8x128xf32> -> vector<8x128xf32>
    %c5_39 = arith.constant 5 : index
    %c0_40 = arith.constant 0 : index
    %c0_41 = arith.constant 0 : index
    %55 = vector.load %arg3[%c5_39, %c0_40, %c0_41] : memref<8x1x128xf32, #tpu.memory_space<vmem>>, vector<1x1x128xf32>
    %56 = vector.shape_cast %55 : vector<1x1x128xf32> to vector<1x128xf32>
    %57 = vector.broadcast %56 : vector<1x128xf32> to vector<8x128xf32>
    %58 = arith.addf %54, %57 : vector<8x128xf32>
    %cst_42 = arith.constant 0.000000e+00 : f32
    %59 = vector.broadcast %cst_42 : f32 to vector<8x128xf32>
    %60 = arith.maximumf %58, %59 : vector<8x128xf32>
    %61 = arith.truncf %60 : vector<8x128xf32> to vector<8x128xbf16>
    %c6 = arith.constant 6 : index
    %c0_43 = arith.constant 0 : index
    %c0_44 = arith.constant 0 : index
    %62 = vector.load %arg2[%c6, %c0_43, %c0_44] : memref<8x128x128xbf16, #tpu.memory_space<vmem>>, vector<1x128x128xbf16>
    %63 = vector.shape_cast %62 : vector<1x128x128xbf16> to vector<128x128xbf16>
    %cst_45 = arith.constant dense<0.000000e+00> : vector<8x128xf32>
    %64 = tpu.matmul %61, %63, %cst_45 {dimension_numbers = #tpu.dot_dimension_numbers<[1], [0], [0], [1], [0, 0, 1, 1], [], []>} : vector<8x128xbf16>, vector<128x128xbf16>, vector<8x128xf32> -> vector<8x128xf32>
    %c6_46 = arith.constant 6 : index
    %c0_47 = arith.constant 0 : index
    %c0_48 = arith.constant 0 : index
    %65 = vector.load %arg3[%c6_46, %c0_47, %c0_48] : memref<8x1x128xf32, #tpu.memory_space<vmem>>, vector<1x1x128xf32>
    %66 = vector.shape_cast %65 : vector<1x1x128xf32> to vector<1x128xf32>
    %67 = vector.broadcast %66 : vector<1x128xf32> to vector<8x128xf32>
    %68 = arith.addf %64, %67 : vector<8x128xf32>
    %cst_49 = arith.constant 0.000000e+00 : f32
    %69 = vector.broadcast %cst_49 : f32 to vector<8x128xf32>
    %70 = arith.maximumf %68, %69 : vector<8x128xf32>
    %71 = arith.truncf %70 : vector<8x128xf32> to vector<8x128xbf16>
    %c7 = arith.constant 7 : index
    %c0_50 = arith.constant 0 : index
    %c0_51 = arith.constant 0 : index
    %72 = vector.load %arg2[%c7, %c0_50, %c0_51] : memref<8x128x128xbf16, #tpu.memory_space<vmem>>, vector<1x128x128xbf16>
    %73 = vector.shape_cast %72 : vector<1x128x128xbf16> to vector<128x128xbf16>
    %cst_52 = arith.constant dense<0.000000e+00> : vector<8x128xf32>
    %74 = tpu.matmul %71, %73, %cst_52 {dimension_numbers = #tpu.dot_dimension_numbers<[1], [0], [0], [1], [0, 0, 1, 1], [], []>} : vector<8x128xbf16>, vector<128x128xbf16>, vector<8x128xf32> -> vector<8x128xf32>
    %c7_53 = arith.constant 7 : index
    %c0_54 = arith.constant 0 : index
    %c0_55 = arith.constant 0 : index
    %75 = vector.load %arg3[%c7_53, %c0_54, %c0_55] : memref<8x1x128xf32, #tpu.memory_space<vmem>>, vector<1x1x128xf32>
    %76 = vector.shape_cast %75 : vector<1x1x128xf32> to vector<1x128xf32>
    %77 = vector.broadcast %76 : vector<1x128xf32> to vector<8x128xf32>
    %78 = arith.addf %74, %77 : vector<8x128xf32>
    %79 = arith.truncf %78 : vector<8x128xf32> to vector<8x128xbf16>
    %c0_56 = arith.constant 0 : index
    %c0_57 = arith.constant 0 : index
    %80 = vector.load %arg4[%c0_56, %c0_57] : memref<8x128xbf16, #tpu.memory_space<vmem>>, vector<8x128xbf16>
    tpu.vector_store %arg4[%c0_56, %c0_57], %79 {strides = array<i32>} : memref<8x128xbf16, #tpu.memory_space<vmem>>, vector<8x128xbf16>,
    return
  }
  func.func @transform_0(%arg0: i32) -> (i32, i32) {
    %c0_i32 = arith.constant 0 : i32
    %c0_i32_0 = arith.constant 0 : i32
    return %arg0, %c0_i32 : i32, i32
  }
  func.func @transform_1(%arg0: i32) -> (i32, i32, i32) {
    %c0_i32 = arith.constant 0 : i32
    %c0_i32_0 = arith.constant 0 : i32
    %c0_i32_1 = arith.constant 0 : i32
    %c0_i32_2 = arith.constant 0 : i32
    return %c0_i32, %c0_i32_0, %c0_i32_1 : i32, i32, i32
  }
  func.func @transform_2(%arg0: i32) -> (i32, i32, i32) {
    %c0_i32 = arith.constant 0 : i32
    %c0_i32_0 = arith.constant 0 : i32
    %c0_i32_1 = arith.constant 0 : i32
    %c0_i32_2 = arith.constant 0 : i32
    return %c0_i32, %c0_i32_0, %c0_i32_1 : i32, i32, i32
  }
  func.func @transform_3(%arg0: i32) -> (i32, i32) {
    %c0_i32 = arith.constant 0 : i32
    %c0_i32_0 = arith.constant 0 : i32
    return %arg0, %c0_i32 : i32, i32
  }
}

</mosaic_0001>

<llo_original>
// kernel: deep_model_forward.1
$region0: #{deep_model_forward.1}
  #allocation0 [shape = 'u32[]', space=smem, size = 0x4, offset = 0x4, fixed_abs, tag = 'smem constant byte address 0x4 - core index']
  #allocation1 [shape = 'u32[144,128]{1,0:T(1,128)}', space=vmem, size = 0x12000, scoped, tag = 'internal scratch']
  %s0 = inlined_call_operand.vmem [shape: f32[8,16], index: 0, kind: input, shape index: {}]
  %s1 = inlined_call_operand.hbm [shape: bf16[8,128,128], index: 1, kind: input, shape index: {}]
  %s2 = inlined_call_operand.vmem [shape: f32[8,1,128], index: 2, kind: input, shape index: {}]
  %s3 = inlined_call_operand.vmem [shape: bf16[8,128], index: 3, kind: output, shape index: {}]
  %s4 = sld [smem:[#allocation0]]
  $region26: #{deep_model_forward.1} parent=0
    _
  %s6 = ssub.s32 1, %s4
  %s7 = scalar_select 0, %s6, %s4
  $region1: #{deep_model_forward.1} parent=0
    #allocation2 [shape = 'u8[262144]{0}', space=vmem, size = 0x40000, scoped, tag = 'input window, operand 1, single buffered']
    #allocation3 [shape = 's32[1]{0}', space=sflag, size = 0x4, scoped, tag = 'scoped memory for deep_model_forward.1']
    %8 = vsyncpa [#allocation3], 0
    // Predicated region
    $region2: #{deep_model_forward.1} parent=1 // pred_check
      _
    $region3: #{deep_model_forward.1} parent=1 // pred_check_branch
      %10 = sbr.rel (0) target = $region5
    $region4: #{deep_model_forward.1} parent=1 // pred_region
      _
    $region5: #{deep_model_forward.1} parent=1 // pred_fallthru
      _
    // Predicated region
    $region6: #{deep_model_forward.1} parent=1 // pred_check
      _
    $region7: #{deep_model_forward.1} parent=1 // pred_check_branch
      %12 = sbr.rel (0) target = $region9
    $region8: #{deep_model_forward.1} parent=1 // pred_region
      %s14 = ssub.s32 8192, 8192
      %15 = vsyncadd [#allocation3], %s14
      %s16 = sshll.u32 [#allocation2], 4
      %s17 = int_to_ptr.vmem [resolvable:$true] %s16
      %22 = dma.hbm_to_vmem [thread:$0]  %s1, 8192, %s17, [#allocation3], 64, 64, 4
    $region9: #{deep_model_forward.1} parent=1 // pred_fallthru
      _
    // Predicated region
    $region10: #{deep_model_forward.1} parent=1 // pred_check
      _
    $region11: #{deep_model_forward.1} parent=1 // pred_check_branch
      %24 = sbr.rel (0) target = $region13
    $region12: #{deep_model_forward.1} parent=1 // pred_region
      _
    $region13: #{deep_model_forward.1} parent=1 // pred_fallthru
      _
    // Predicated region
    $region14: #{deep_model_forward.1} parent=1 // pred_check
      _
    $region15: #{deep_model_forward.1} parent=1 // pred_check_branch
      %26 = sbr.rel (0) target = $region17
    $region16: #{deep_model_forward.1} parent=1 // pred_region
      %27 = dma.done [#allocation3], 8192
    $region17: #{deep_model_forward.1} parent=1 // pred_fallthru
      _
    %v29 = vld [vmem:[%s0] sm:$0xff]
    %v30 = vpack.c.bf16 %v29, %v29
    %v31 = vld [vmem:[#allocation2] sm:$0xf]
    %v32 = vld [vmem:[#allocation2 + $0x4] sm:$0xf]
    %v33 = vld [vmem:[%s2] sm:$0x1]
    %v35 = vlaneseq
    %v36 = vshrl.u32 %v35, 7
    %v37 = vsub.s32 0, %v36
    %v38 = vrot.slane %v33, %v37
    %v42 = vunpack.c.l.b16 %v31
    %v43 = vunpack.c.l.b16 %v32
    %v44 = vpack.c.b16 %v43, %v42
    %vm46 = vcmask 130048
    %v48 = vsel %vm46, %v30, 0
    %50 = vmatprep.subr.bf16.mxu0 0
    %51 = vmatpush1.bf16.msra.mxu0 0
    %52 = vmatprep.subr.bf16.mxu0 0
    %53 = vmatpush1.bf16.msra.mxu0 0
    %54 = vmatprep.subr.bf16.mxu0 0
    %55 = vmatpush1.bf16.msra.mxu0 0
    %56 = vmatprep.subr.bf16.mxu0 0
    %57 = vmatpush1.bf16.msra.mxu0 0
    %58 = vmatprep.subr.bf16.mxu0 0
    %59 = vmatpush1.bf16.msra.mxu0 0
    %60 = vmatprep.subr.bf16.mxu0 0
    %61 = vmatpush1.bf16.msra.mxu0 0
    %62 = vmatprep.subr.bf16.mxu0 0
    %63 = vmatpush1.bf16.msra.mxu0 0
    %64 = vmatprep.subr.bf16.mxu0 0
    %65 = vmatpush1.bf16.msra.mxu0 %v44
    %66 = vmatprep.subr.bf16.mxu0 0
    %67 = vmatpush2.bf16.msra.mxu0 0
    %68 = vmatprep.subr.bf16.mxu0 0
    %69 = vmatpush2.bf16.msra.mxu0 0
    %70 = vmatprep.subr.bf16.mxu0 0
    %71 = vmatpush2.bf16.msra.mxu0 0
    %72 = vmatprep.subr.bf16.mxu0 0
    %73 = vmatpush2.bf16.msra.mxu0 0
    %74 = vmatprep.subr.bf16.mxu0 0
    %75 = vmatpush2.bf16.msra.mxu0 0
    %76 = vmatprep.subr.bf16.mxu0 0
    %77 = vmatpush2.bf16.msra.mxu0 0
    %78 = vmatprep.subr.bf16.mxu0 0
    %79 = vmatpush2.bf16.msra.mxu0 0
    %80 = vmatprep.subr.bf16.mxu0 0
    %81 = vmatpush2.bf16.msra.mxu0 0
    %82 = vmatprep.mubr.bf16.mxu0 0
    %83 = vmatmul.mubr.bf16.gmra.mxu0 %v48
    %v84 = vpop.f32.mrf.mxu0
    %v85 = vadd.f32 %v38, %v84
    %v86 = vpop.f32.mrf.mxu0
    %v87 = vpop.f32.mrf.mxu0
    %v88 = vpop.f32.mrf.mxu0
    %89 = vdwg.mxu0
    %v90 = vmax.f32 %v85, 0.0
    %v91 = vpack.c.bf16 %v90, %v90
    %s92 = scalar_lea.vmem [#allocation2], 64
    %v93 = vld [vmem:[%s92] sm:$0xf]
    %v94 = vld [vmem:[%s92 + $0x4] sm:$0xf]
    %v95 = vld [vmem:[%s92 + $0x8] sm:$0xf]
    %v96 = vld [vmem:[%s92 + $0xc] sm:$0xf]
    %v97 = vld [vmem:[%s92 + $0x10] sm:$0xf]
    %v98 = vld [vmem:[%s92 + $0x14] sm:$0xf]
    %v99 = vld [vmem:[%s92 + $0x18] sm:$0xf]
    %v100 = vld [vmem:[%s92 + $0x1c] sm:$0xf]
    %v101 = vld [vmem:[%s92 + $0x20] sm:$0xf]
    %v102 = vld [vmem:[%s92 + $0x24] sm:$0xf]
    %v103 = vld [vmem:[%s92 + $0x28] sm:$0xf]
    %v104 = vld [vmem:[%s92 + $0x2c] sm:$0xf]
    %v105 = vld [vmem:[%s92 + $0x30] sm:$0xf]
    %v106 = vld [vmem:[%s92 + $0x34] sm:$0xf]
    %v107 = vld [vmem:[%s92 + $0x38] sm:$0xf]
    %v108 = vld [vmem:[%s92 + $0x3c] sm:$0xf]
    %s109 = scalar_lea.vmem %s2, 1
    %v110 = vld [vmem:[%s109] sm:$0x1]
    %v112 = vlaneseq
    %v113 = vshrl.u32 %v112, 7
    %v114 = vsub.s32 0, %v113
    %v115 = vrot.slane %v110, %v114
    %v133 = vunpack.c.l.b16 %v93
    %v134 = vunpack.c.l.b16 %v94
    %v135 = vunpack.c.l.b16 %v95
    %v136 = vunpack.c.l.b16 %v96
    %v137 = vunpack.c.l.b16 %v97
    %v138 = vunpack.c.l.b16 %v98
    %v139 = vunpack.c.l.b16 %v99
    %v140 = vunpack.c.l.b16 %v100
    %v141 = vunpack.c.l.b16 %v101
    %v142 = vunpack.c.l.b16 %v102
    %v143 = vunpack.c.l.b16 %v103
    %v144 = vunpack.c.l.b16 %v104
    %v145 = vunpack.c.l.b16 %v105
    %v146 = vunpack.c.l.b16 %v106
    %v147 = vunpack.c.l.b16 %v107
    %v148 = vunpack.c.l.b16 %v108
    %v149 = vpack.c.b16 %v134, %v133
    %v150 = vpack.c.b16 %v136, %v135
    %v151 = vpack.c.b16 %v138, %v137
    %v152 = vpack.c.b16 %v140, %v139
    %v153 = vpack.c.b16 %v142, %v141
    %v154 = vpack.c.b16 %v144, %v143
    %v155 = vpack.c.b16 %v146, %v145
    %v156 = vpack.c.b16 %v148, %v147
    %165 = vmatprep.subr.bf16.mxu0 0
    %166 = vmatpush1.bf16.msra.mxu0 %v156
    %167 = vmatprep.subr.bf16.mxu0 0
    %168 = vmatpush1.bf16.msra.mxu0 %v155
    %169 = vmatprep.subr.bf16.mxu0 0
    %170 = vmatpush1.bf16.msra.mxu0 %v154
    %171 = vmatprep.subr.bf16.mxu0 0
    %172 = vmatpush1.bf16.msra.mxu0 %v153
    %173 = vmatprep.subr.bf16.mxu0 0
    %174 = vmatpush1.bf16.msra.mxu0 %v152
    %175 = vmatprep.subr.bf16.mxu0 0
    %176 = vmatpush1.bf16.msra.mxu0 %v151
    %177 = vmatprep.subr.bf16.mxu0 0
    %178 = vmatpush1.bf16.msra.mxu0 %v150
    %179 = vmatprep.subr.bf16.mxu0 0
    %180 = vmatpush1.bf16.msra.mxu0 %v149
    %181 = vmatprep.subr.bf16.mxu0 0
    %182 = vmatpush2.bf16.msra.mxu0 0
    %183 = vmatprep.subr.bf16.mxu0 0
    %184 = vmatpush2.bf16.msra.mxu0 0
    %185 = vmatprep.subr.bf16.mxu0 0
    %186 = vmatpush2.bf16.msra.mxu0 0
    %187 = vmatprep.subr.bf16.mxu0 0
    %188 = vmatpush2.bf16.msra.mxu0 0
    %189 = vmatprep.subr.bf16.mxu0 0
    %190 = vmatpush2.bf16.msra.mxu0 0
    %191 = vmatprep.subr.bf16.mxu0 0
    %192 = vmatpush2.bf16.msra.mxu0 0
    %193 = vmatprep.subr.bf16.mxu0 0
    %194 = vmatpush2.bf16.msra.mxu0 0
    %195 = vmatprep.subr.bf16.mxu0 0
    %196 = vmatpush2.bf16.msra.mxu0 0
    %197 = vmatprep.mubr.bf16.mxu0 0
    %198 = vmatmul.mubr.bf16.gmra.mxu0 %v91
    %v199 = vpop.f32.mrf.mxu0
    %v200 = vadd.f32 %v115, %v199
    %v201 = vpop.f32.mrf.mxu0
    %v202 = vpop.f32.mrf.mxu0
    %v203 = vpop.f32.mrf.mxu0
    %204 = vdwg.mxu0
    %v205 = vmax.f32 %v200, 0.0
    %v206 = vpack.c.bf16 %v205, %v205
    %s207 = scalar_lea.vmem [#allocation2], 128
    %v208 = vld [vmem:[%s207] sm:$0xf]
    %v209 = vld [vmem:[%s207 + $0x4] sm:$0xf]
    %v210 = vld [vmem:[%s207 + $0x8] sm:$0xf]
    %v211 = vld [vmem:[%s207 + $0xc] sm:$0xf]
    %v212 = vld [vmem:[%s207 + $0x10] sm:$0xf]
    %v213 = vld [vmem:[%s207 + $0x14] sm:$0xf]
    %v214 = vld [vmem:[%s207 + $0x18] sm:$0xf]
    %v215 = vld [vmem:[%s207 + $0x1c] sm:$0xf]
    %v216 = vld [vmem:[%s207 + $0x20] sm:$0xf]
    %v217 = vld [vmem:[%s207 + $0x24] sm:$0xf]
    %v218 = vld [vmem:[%s207 + $0x28] sm:$0xf]
    %v219 = vld [vmem:[%s207 + $0x2c] sm:$0xf]
    %v220 = vld [vmem:[%s207 + $0x30] sm:$0xf]
    %v221 = vld [vmem:[%s207 + $0x34] sm:$0xf]
    %v222 = vld [vmem:[%s207 + $0x38] sm:$0xf]
    %v223 = vld [vmem:[%s207 + $0x3c] sm:$0xf]
    %s224 = scalar_lea.vmem %s2, 2
    %v225 = vld [vmem:[%s224] sm:$0x1]
    %v227 = vlaneseq
    %v228 = vshrl.u32 %v227, 7
    %v229 = vsub.s32 0, %v228
    %v230 = vrot.slane %v225, %v229
    %v248 = vunpack.c.l.b16 %v208
    %v249 = vunpack.c.l.b16 %v209
    %v250 = vunpack.c.l.b16 %v210
    %v251 = vunpack.c.l.b16 %v211
    %v252 = vunpack.c.l.b16 %v212
    %v253 = vunpack.c.l.b16 %v213
    %v254 = vunpack.c.l.b16 %v214
    %v255 = vunpack.c.l.b16 %v215
    %v256 = vunpack.c.l.b16 %v216
    %v257 = vunpack.c.l.b16 %v217
    %v258 = vunpack.c.l.b16 %v218
    %v259 = vunpack.c.l.b16 %v219
    %v260 = vunpack.c.l.b16 %v220
    %v261 = vunpack.c.l.b16 %v221
    %v262 = vunpack.c.l.b16 %v222
    %v263 = vunpack.c.l.b16 %v223
    %v264 = vpack.c.b16 %v249, %v248
    %v265 = vpack.c.b16 %v251, %v250
    %v266 = vpack.c.b16 %v253, %v252
    %v267 = vpack.c.b16 %v255, %v254
    %v268 = vpack.c.b16 %v257, %v256
    %v269 = vpack.c.b16 %v259, %v258
    %v270 = vpack.c.b16 %v261, %v260
    %v271 = vpack.c.b16 %v263, %v262
    %280 = vmatprep.subr.bf16.mxu0 0
    %281 = vmatpush1.bf16.msra.mxu0 %v271
    %282 = vmatprep.subr.bf16.mxu0 0
    %283 = vmatpush1.bf16.msra.mxu0 %v270
    %284 = vmatprep.subr.bf16.mxu0 0
    %285 = vmatpush1.bf16.msra.mxu0 %v269
    %286 = vmatprep.subr.bf16.mxu0 0
    %287 = vmatpush1.bf16.msra.mxu0 %v268
    %288 = vmatprep.subr.bf16.mxu0 0
    %289 = vmatpush1.bf16.msra.mxu0 %v267
    %290 = vmatprep.subr.bf16.mxu0 0
    %291 = vmatpush1.bf16.msra.mxu0 %v266
    %292 = vmatprep.subr.bf16.mxu0 0
    %293 = vmatpush1.bf16.msra.mxu0 %v265
    %294 = vmatprep.subr.bf16.mxu0 0
    %295 = vmatpush1.bf16.msra.mxu0 %v264
    %296 = vmatprep.subr.bf16.mxu0 0
    %297 = vmatpush2.bf16.msra.mxu0 0
    %298 = vmatprep.subr.bf16.mxu0 0
    %299 = vmatpush2.bf16.msra.mxu0 0
    %300 = vmatprep.subr.bf16.mxu0 0
    %301 = vmatpush2.bf16.msra.mxu0 0
    %302 = vmatprep.subr.bf16.mxu0 0
    %303 = vmatpush2.bf16.msra.mxu0 0
    %304 = vmatprep.subr.bf16.mxu0 0
    %305 = vmatpush2.bf16.msra.mxu0 0
    %306 = vmatprep.subr.bf16.mxu0 0
    %307 = vmatpush2.bf16.msra.mxu0 0
    %308 = vmatprep.subr.bf16.mxu0 0
    %309 = vmatpush2.bf16.msra.mxu0 0
    %310 = vmatprep.subr.bf16.mxu0 0
    %311 = vmatpush2.bf16.msra.mxu0 0
    %312 = vmatprep.mubr.bf16.mxu0 0
    %313 = vmatmul.mubr.bf16.gmra.mxu0 %v206
    %v314 = vpop.f32.mrf.mxu0
    %v315 = vadd.f32 %v230, %v314
    %v316 = vpop.f32.mrf.mxu0
    %v317 = vpop.f32.mrf.mxu0
    %v318 = vpop.f32.mrf.mxu0
    %319 = vdwg.mxu0
    %v320 = vmax.f32 %v315, 0.0
    %v321 = vpack.c.bf16 %v320, %v320
    %s322 = scalar_lea.vmem [#allocation2], 192
    %v323 = vld [vmem:[%s322] sm:$0xf]
    %v324 = vld [vmem:[%s322 + $0x4] sm:$0xf]
    %v325 = vld [vmem:[%s322 + $0x8] sm:$0xf]
    %v326 = vld [vmem:[%s322 + $0xc] sm:$0xf]
    %v327 = vld [vmem:[%s322 + $0x10] sm:$0xf]
    %v328 = vld [vmem:[%s322 + $0x14] sm:$0xf]
    %v329 = vld [vmem:[%s322 + $0x18] sm:$0xf]
    %v330 = vld [vmem:[%s322 + $0x1c] sm:$0xf]
    %v331 = vld [vmem:[%s322 + $0x20] sm:$0xf]
    %v332 = vld [vmem:[%s322 + $0x24] sm:$0xf]
    %v333 = vld [vmem:[%s322 + $0x28] sm:$0xf]
    %v334 = vld [vmem:[%s322 + $0x2c] sm:$0xf]
    %v335 = vld [vmem:[%s322 + $0x30] sm:$0xf]
    %v336 = vld [vmem:[%s322 + $0x34] sm:$0xf]
    %v337 = vld [vmem:[%s322 + $0x38] sm:$0xf]
    %v338 = vld [vmem:[%s322 + $0x3c] sm:$0xf]
    %s339 = scalar_lea.vmem %s2, 3
    %v340 = vld [vmem:[%s339] sm:$0x1]
    %v342 = vlaneseq
    %v343 = vshrl.u32 %v342, 7
    %v344 = vsub.s32 0, %v343
    %v345 = vrot.slane %v340, %v344
    %v363 = vunpack.c.l.b16 %v323
    %v364 = vunpack.c.l.b16 %v324
    %v365 = vunpack.c.l.b16 %v325
    %v366 = vunpack.c.l.b16 %v326
    %v367 = vunpack.c.l.b16 %v327
    %v368 = vunpack.c.l.b16 %v328
    %v369 = vunpack.c.l.b16 %v329
    %v370 = vunpack.c.l.b16 %v330
    %v371 = vunpack.c.l.b16 %v331
    %v372 = vunpack.c.l.b16 %v332
    %v373 = vunpack.c.l.b16 %v333
    %v374 = vunpack.c.l.b16 %v334
    %v375 = vunpack.c.l.b16 %v335
    %v376 = vunpack.c.l.b16 %v336
    %v377 = vunpack.c.l.b16 %v337
    %v378 = vunpack.c.l.b16 %v338
    %v379 = vpack.c.b16 %v364, %v363
    %v380 = vpack.c.b16 %v366, %v365
    %v381 = vpack.c.b16 %v368, %v367
    %v382 = vpack.c.b16 %v370, %v369
    %v383 = vpack.c.b16 %v372, %v371
    %v384 = vpack.c.b16 %v374, %v373
    %v385 = vpack.c.b16 %v376, %v375
    %v386 = vpack.c.b16 %v378, %v377
    %395 = vmatprep.subr.bf16.mxu0 0
    %396 = vmatpush1.bf16.msra.mxu0 %v386
    %397 = vmatprep.subr.bf16.mxu0 0
    %398 = vmatpush1.bf16.msra.mxu0 %v385
    %399 = vmatprep.subr.bf16.mxu0 0
    %400 = vmatpush1.bf16.msra.mxu0 %v384
    %401 = vmatprep.subr.bf16.mxu0 0
    %402 = vmatpush1.bf16.msra.mxu0 %v383
    %403 = vmatprep.subr.bf16.mxu0 0
    %404 = vmatpush1.bf16.msra.mxu0 %v382
    %405 = vmatprep.subr.bf16.mxu0 0
    %406 = vmatpush1.bf16.msra.mxu0 %v381
    %407 = vmatprep.subr.bf16.mxu0 0
    %408 = vmatpush1.bf16.msra.mxu0 %v380
    %409 = vmatprep.subr.bf16.mxu0 0
    %410 = vmatpush1.bf16.msra.mxu0 %v379
    %411 = vmatprep.subr.bf16.mxu0 0
    %412 = vmatpush2.bf16.msra.mxu0 0
    %413 = vmatprep.subr.bf16.mxu0 0
    %414 = vmatpush2.bf16.msra.mxu0 0
    %415 = vmatprep.subr.bf16.mxu0 0
    %416 = vmatpush2.bf16.msra.mxu0 0
    %417 = vmatprep.subr.bf16.mxu0 0
    %418 = vmatpush2.bf16.msra.mxu0 0
    %419 = vmatprep.subr.bf16.mxu0 0
    %420 = vmatpush2.bf16.msra.mxu0 0
    %421 = vmatprep.subr.bf16.mxu0 0
    %422 = vmatpush2.bf16.msra.mxu0 0
    %423 = vmatprep.subr.bf16.mxu0 0
    %424 = vmatpush2.bf16.msra.mxu0 0
    %425 = vmatprep.subr.bf16.mxu0 0
    %426 = vmatpush2.bf16.msra.mxu0 0
    %427 = vmatprep.mubr.bf16.mxu0 0
    %428 = vmatmul.mubr.bf16.gmra.mxu0 %v321
    %v429 = vpop.f32.mrf.mxu0
    %v430 = vadd.f32 %v345, %v429
    %v431 = vpop.f32.mrf.mxu0
    %v432 = vpop.f32.mrf.mxu0
    %v433 = vpop.f32.mrf.mxu0
    %434 = vdwg.mxu0
    %v435 = vmax.f32 %v430, 0.0
    %v436 = vpack.c.bf16 %v435, %v435
    %s437 = scalar_lea.vmem [#allocation2], 256
    %v438 = vld [vmem:[%s437] sm:$0xf]
    %v439 = vld [vmem:[%s437 + $0x4] sm:$0xf]
    %v440 = vld [vmem:[%s437 + $0x8] sm:$0xf]
    %v441 = vld [vmem:[%s437 + $0xc] sm:$0xf]
    %v442 = vld [vmem:[%s437 + $0x10] sm:$0xf]
    %v443 = vld [vmem:[%s437 + $0x14] sm:$0xf]
    %v444 = vld [vmem:[%s437 + $0x18] sm:$0xf]
    %v445 = vld [vmem:[%s437 + $0x1c] sm:$0xf]
    %v446 = vld [vmem:[%s437 + $0x20] sm:$0xf]
    %v447 = vld [vmem:[%s437 + $0x24] sm:$0xf]
    %v448 = vld [vmem:[%s437 + $0x28] sm:$0xf]
    %v449 = vld [vmem:[%s437 + $0x2c] sm:$0xf]
    %v450 = vld [vmem:[%s437 + $0x30] sm:$0xf]
    %v451 = vld [vmem:[%s437 + $0x34] sm:$0xf]
    %v452 = vld [vmem:[%s437 + $0x38] sm:$0xf]
    %v453 = vld [vmem:[%s437 + $0x3c] sm:$0xf]
    %s454 = scalar_lea.vmem %s2, 4
    %v455 = vld [vmem:[%s454] sm:$0x1]
    %v457 = vlaneseq
    %v458 = vshrl.u32 %v457, 7
    %v459 = vsub.s32 0, %v458
    %v460 = vrot.slane %v455, %v459
    %v478 = vunpack.c.l.b16 %v438
    %v479 = vunpack.c.l.b16 %v439
    %v480 = vunpack.c.l.b16 %v440
    %v481 = vunpack.c.l.b16 %v441
    %v482 = vunpack.c.l.b16 %v442
    %v483 = vunpack.c.l.b16 %v443
    %v484 = vunpack.c.l.b16 %v444
    %v485 = vunpack.c.l.b16 %v445
    %v486 = vunpack.c.l.b16 %v446
    %v487 = vunpack.c.l.b16 %v447
    %v488 = vunpack.c.l.b16 %v448
    %v489 = vunpack.c.l.b16 %v449
    %v490 = vunpack.c.l.b16 %v450
    %v491 = vunpack.c.l.b16 %v451
    %v492 = vunpack.c.l.b16 %v452
    %v493 = vunpack.c.l.b16 %v453
    %v494 = vpack.c.b16 %v479, %v478
    %v495 = vpack.c.b16 %v481, %v480
    %v496 = vpack.c.b16 %v483, %v482
    %v497 = vpack.c.b16 %v485, %v484
    %v498 = vpack.c.b16 %v487, %v486
    %v499 = vpack.c.b16 %v489, %v488
    %v500 = vpack.c.b16 %v491, %v490
    %v501 = vpack.c.b16 %v493, %v492
    %510 = vmatprep.subr.bf16.mxu0 0
    %511 = vmatpush1.bf16.msra.mxu0 %v501
    %512 = vmatprep.subr.bf16.mxu0 0
    %513 = vmatpush1.bf16.msra.mxu0 %v500
    %514 = vmatprep.subr.bf16.mxu0 0
    %515 = vmatpush1.bf16.msra.mxu0 %v499
    %516 = vmatprep.subr.bf16.mxu0 0
    %517 = vmatpush1.bf16.msra.mxu0 %v498
    %518 = vmatprep.subr.bf16.mxu0 0
    %519 = vmatpush1.bf16.msra.mxu0 %v497
    %520 = vmatprep.subr.bf16.mxu0 0
    %521 = vmatpush1.bf16.msra.mxu0 %v496
    %522 = vmatprep.subr.bf16.mxu0 0
    %523 = vmatpush1.bf16.msra.mxu0 %v495
    %524 = vmatprep.subr.bf16.mxu0 0
    %525 = vmatpush1.bf16.msra.mxu0 %v494
    %526 = vmatprep.subr.bf16.mxu0 0
    %527 = vmatpush2.bf16.msra.mxu0 0
    %528 = vmatprep.subr.bf16.mxu0 0
    %529 = vmatpush2.bf16.msra.mxu0 0
    %530 = vmatprep.subr.bf16.mxu0 0
    %531 = vmatpush2.bf16.msra.mxu0 0
    %532 = vmatprep.subr.bf16.mxu0 0
    %533 = vmatpush2.bf16.msra.mxu0 0
    %534 = vmatprep.subr.bf16.mxu0 0
    %535 = vmatpush2.bf16.msra.mxu0 0
    %536 = vmatprep.subr.bf16.mxu0 0
    %537 = vmatpush2.bf16.msra.mxu0 0
    %538 = vmatprep.subr.bf16.mxu0 0
    %539 = vmatpush2.bf16.msra.mxu0 0
    %540 = vmatprep.subr.bf16.mxu0 0
    %541 = vmatpush2.bf16.msra.mxu0 0
    %542 = vmatprep.mubr.bf16.mxu0 0
    %543 = vmatmul.mubr.bf16.gmra.mxu0 %v436
    %v544 = vpop.f32.mrf.mxu0
    %v545 = vadd.f32 %v460, %v544
    %v546 = vpop.f32.mrf.mxu0
    %v547 = vpop.f32.mrf.mxu0
    %v548 = vpop.f32.mrf.mxu0
    %549 = vdwg.mxu0
    %v550 = vmax.f32 %v545, 0.0
    %v551 = vpack.c.bf16 %v550, %v550
    %s552 = scalar_lea.vmem [#allocation2], 320
    %v553 = vld [vmem:[%s552] sm:$0xf]
    %v554 = vld [vmem:[%s552 + $0x4] sm:$0xf]
    %v555 = vld [vmem:[%s552 + $0x8] sm:$0xf]
    %v556 = vld [vmem:[%s552 + $0xc] sm:$0xf]
    %v557 = vld [vmem:[%s552 + $0x10] sm:$0xf]
    %v558 = vld [vmem:[%s552 + $0x14] sm:$0xf]
    %v559 = vld [vmem:[%s552 + $0x18] sm:$0xf]
    %v560 = vld [vmem:[%s552 + $0x1c] sm:$0xf]
    %v561 = vld [vmem:[%s552 + $0x20] sm:$0xf]
    %v562 = vld [vmem:[%s552 + $0x24] sm:$0xf]
    %v563 = vld [vmem:[%s552 + $0x28] sm:$0xf]
    %v564 = vld [vmem:[%s552 + $0x2c] sm:$0xf]
    %v565 = vld [vmem:[%s552 + $0x30] sm:$0xf]
    %v566 = vld [vmem:[%s552 + $0x34] sm:$0xf]
    %v567 = vld [vmem:[%s552 + $0x38] sm:$0xf]
    %v568 = vld [vmem:[%s552 + $0x3c] sm:$0xf]
    %s569 = scalar_lea.vmem %s2, 5
    %v570 = vld [vmem:[%s569] sm:$0x1]
    %v572 = vlaneseq
    %v573 = vshrl.u32 %v572, 7
    %v574 = vsub.s32 0, %v573
    %v575 = vrot.slane %v570, %v574
    %v593 = vunpack.c.l.b16 %v553
    %v594 = vunpack.c.l.b16 %v554
    %v595 = vunpack.c.l.b16 %v555
    %v596 = vunpack.c.l.b16 %v556
    %v597 = vunpack.c.l.b16 %v557
    %v598 = vunpack.c.l.b16 %v558
    %v599 = vunpack.c.l.b16 %v559
    %v600 = vunpack.c.l.b16 %v560
    %v601 = vunpack.c.l.b16 %v561
    %v602 = vunpack.c.l.b16 %v562
    %v603 = vunpack.c.l.b16 %v563
    %v604 = vunpack.c.l.b16 %v564
    %v605 = vunpack.c.l.b16 %v565
    %v606 = vunpack.c.l.b16 %v566
    %v607 = vunpack.c.l.b16 %v567
    %v608 = vunpack.c.l.b16 %v568
    %v609 = vpack.c.b16 %v594, %v593
    %v610 = vpack.c.b16 %v596, %v595
    %v611 = vpack.c.b16 %v598, %v597
    %v612 = vpack.c.b16 %v600, %v599
    %v613 = vpack.c.b16 %v602, %v601
    %v614 = vpack.c.b16 %v604, %v603
    %v615 = vpack.c.b16 %v606, %v605
    %v616 = vpack.c.b16 %v608, %v607
    %625 = vmatprep.subr.bf16.mxu0 0
    %626 = vmatpush1.bf16.msra.mxu0 %v616
    %627 = vmatprep.subr.bf16.mxu0 0
    %628 = vmatpush1.bf16.msra.mxu0 %v615
    %629 = vmatprep.subr.bf16.mxu0 0
    %630 = vmatpush1.bf16.msra.mxu0 %v614
    %631 = vmatprep.subr.bf16.mxu0 0
    %632 = vmatpush1.bf16.msra.mxu0 %v613
    %633 = vmatprep.subr.bf16.mxu0 0
    %634 = vmatpush1.bf16.msra.mxu0 %v612
    %635 = vmatprep.subr.bf16.mxu0 0
    %636 = vmatpush1.bf16.msra.mxu0 %v611
    %637 = vmatprep.subr.bf16.mxu0 0
    %638 = vmatpush1.bf16.msra.mxu0 %v610
    %639 = vmatprep.subr.bf16.mxu0 0
    %640 = vmatpush1.bf16.msra.mxu0 %v609
    %641 = vmatprep.subr.bf16.mxu0 0
    %642 = vmatpush2.bf16.msra.mxu0 0
    %643 = vmatprep.subr.bf16.mxu0 0
    %644 = vmatpush2.bf16.msra.mxu0 0
    %645 = vmatprep.subr.bf16.mxu0 0
    %646 = vmatpush2.bf16.msra.mxu0 0
    %647 = vmatprep.subr.bf16.mxu0 0
    %648 = vmatpush2.bf16.msra.mxu0 0
    %649 = vmatprep.subr.bf16.mxu0 0
    %650 = vmatpush2.bf16.msra.mxu0 0
    %651 = vmatprep.subr.bf16.mxu0 0
    %652 = vmatpush2.bf16.msra.mxu0 0
    %653 = vmatprep.subr.bf16.mxu0 0
    %654 = vmatpush2.bf16.msra.mxu0 0
    %655 = vmatprep.subr.bf16.mxu0 0
    %656 = vmatpush2.bf16.msra.mxu0 0
    %657 = vmatprep.mubr.bf16.mxu0 0
    %658 = vmatmul.mubr.bf16.gmra.mxu0 %v551
    %v659 = vpop.f32.mrf.mxu0
    %v660 = vadd.f32 %v575, %v659
    %v661 = vpop.f32.mrf.mxu0
    %v662 = vpop.f32.mrf.mxu0
    %v663 = vpop.f32.mrf.mxu0
    %664 = vdwg.mxu0
    %v665 = vmax.f32 %v660, 0.0
    %v666 = vpack.c.bf16 %v665, %v665
    %s667 = scalar_lea.vmem [#allocation2], 384
    %v668 = vld [vmem:[%s667] sm:$0xf]
    %v669 = vld [vmem:[%s667 + $0x4] sm:$0xf]
    %v670 = vld [vmem:[%s667 + $0x8] sm:$0xf]
    %v671 = vld [vmem:[%s667 + $0xc] sm:$0xf]
    %v672 = vld [vmem:[%s667 + $0x10] sm:$0xf]
    %v673 = vld [vmem:[%s667 + $0x14] sm:$0xf]
    %v674 = vld [vmem:[%s667 + $0x18] sm:$0xf]
    %v675 = vld [vmem:[%s667 + $0x1c] sm:$0xf]
    %v676 = vld [vmem:[%s667 + $0x20] sm:$0xf]
    %v677 = vld [vmem:[%s667 + $0x24] sm:$0xf]
    %v678 = vld [vmem:[%s667 + $0x28] sm:$0xf]
    %v679 = vld [vmem:[%s667 + $0x2c] sm:$0xf]
    %v680 = vld [vmem:[%s667 + $0x30] sm:$0xf]
    %v681 = vld [vmem:[%s667 + $0x34] sm:$0xf]
    %v682 = vld [vmem:[%s667 + $0x38] sm:$0xf]
    %v683 = vld [vmem:[%s667 + $0x3c] sm:$0xf]
    %s684 = scalar_lea.vmem %s2, 6
    %v685 = vld [vmem:[%s684] sm:$0x1]
    %v687 = vlaneseq
    %v688 = vshrl.u32 %v687, 7
    %v689 = vsub.s32 0, %v688
    %v690 = vrot.slane %v685, %v689
    %v708 = vunpack.c.l.b16 %v668
    %v709 = vunpack.c.l.b16 %v669
    %v710 = vunpack.c.l.b16 %v670
    %v711 = vunpack.c.l.b16 %v671
    %v712 = vunpack.c.l.b16 %v672
    %v713 = vunpack.c.l.b16 %v673
    %v714 = vunpack.c.l.b16 %v674
    %v715 = vunpack.c.l.b16 %v675
    %v716 = vunpack.c.l.b16 %v676
    %v717 = vunpack.c.l.b16 %v677
    %v718 = vunpack.c.l.b16 %v678
    %v719 = vunpack.c.l.b16 %v679
    %v720 = vunpack.c.l.b16 %v680
    %v721 = vunpack.c.l.b16 %v681
    %v722 = vunpack.c.l.b16 %v682
    %v723 = vunpack.c.l.b16 %v683
    %v724 = vpack.c.b16 %v709, %v708
    %v725 = vpack.c.b16 %v711, %v710
    %v726 = vpack.c.b16 %v713, %v712
    %v727 = vpack.c.b16 %v715, %v714
    %v728 = vpack.c.b16 %v717, %v716
    %v729 = vpack.c.b16 %v719, %v718
    %v730 = vpack.c.b16 %v721, %v720
    %v731 = vpack.c.b16 %v723, %v722
    %740 = vmatprep.subr.bf16.mxu0 0
    %741 = vmatpush1.bf16.msra.mxu0 %v731
    %742 = vmatprep.subr.bf16.mxu0 0
    %743 = vmatpush1.bf16.msra.mxu0 %v730
    %744 = vmatprep.subr.bf16.mxu0 0
    %745 = vmatpush1.bf16.msra.mxu0 %v729
    %746 = vmatprep.subr.bf16.mxu0 0
    %747 = vmatpush1.bf16.msra.mxu0 %v728
    %748 = vmatprep.subr.bf16.mxu0 0
    %749 = vmatpush1.bf16.msra.mxu0 %v727
    %750 = vmatprep.subr.bf16.mxu0 0
    %751 = vmatpush1.bf16.msra.mxu0 %v726
    %752 = vmatprep.subr.bf16.mxu0 0
    %753 = vmatpush1.bf16.msra.mxu0 %v725
    %754 = vmatprep.subr.bf16.mxu0 0
    %755 = vmatpush1.bf16.msra.mxu0 %v724
    %756 = vmatprep.subr.bf16.mxu0 0
    %757 = vmatpush2.bf16.msra.mxu0 0
    %758 = vmatprep.subr.bf16.mxu0 0
    %759 = vmatpush2.bf16.msra.mxu0 0
    %760 = vmatprep.subr.bf16.mxu0 0
    %761 = vmatpush2.bf16.msra.mxu0 0
    %762 = vmatprep.subr.bf16.mxu0 0
    %763 = vmatpush2.bf16.msra.mxu0 0
    %764 = vmatprep.subr.bf16.mxu0 0
    %765 = vmatpush2.bf16.msra.mxu0 0
    %766 = vmatprep.subr.bf16.mxu0 0
    %767 = vmatpush2.bf16.msra.mxu0 0
    %768 = vmatprep.subr.bf16.mxu0 0
    %769 = vmatpush2.bf16.msra.mxu0 0
    %770 = vmatprep.subr.bf16.mxu0 0
    %771 = vmatpush2.bf16.msra.mxu0 0
    %772 = vmatprep.mubr.bf16.mxu0 0
    %773 = vmatmul.mubr.bf16.gmra.mxu0 %v666
    %v774 = vpop.f32.mrf.mxu0
    %v775 = vadd.f32 %v690, %v774
    %v776 = vpop.f32.mrf.mxu0
    %v777 = vpop.f32.mrf.mxu0
    %v778 = vpop.f32.mrf.mxu0
    %779 = vdwg.mxu0
    %v780 = vmax.f32 %v775, 0.0
    %v781 = vpack.c.bf16 %v780, %v780
    %s782 = scalar_lea.vmem [#allocation2], 448
    %v783 = vld [vmem:[%s782] sm:$0xf]
    %v784 = vld [vmem:[%s782 + $0x4] sm:$0xf]
    %v785 = vld [vmem:[%s782 + $0x8] sm:$0xf]
    %v786 = vld [vmem:[%s782 + $0xc] sm:$0xf]
    %v787 = vld [vmem:[%s782 + $0x10] sm:$0xf]
    %v788 = vld [vmem:[%s782 + $0x14] sm:$0xf]
    %v789 = vld [vmem:[%s782 + $0x18] sm:$0xf]
    %v790 = vld [vmem:[%s782 + $0x1c] sm:$0xf]
    %v791 = vld [vmem:[%s782 + $0x20] sm:$0xf]
    %v792 = vld [vmem:[%s782 + $0x24] sm:$0xf]
    %v793 = vld [vmem:[%s782 + $0x28] sm:$0xf]
    %v794 = vld [vmem:[%s782 + $0x2c] sm:$0xf]
    %v795 = vld [vmem:[%s782 + $0x30] sm:$0xf]
    %v796 = vld [vmem:[%s782 + $0x34] sm:$0xf]
    %v797 = vld [vmem:[%s782 + $0x38] sm:$0xf]
    %v798 = vld [vmem:[%s782 + $0x3c] sm:$0xf]
    %s799 = scalar_lea.vmem %s2, 7
    %v800 = vld [vmem:[%s799] sm:$0x1]
    %v802 = vlaneseq
    %v803 = vshrl.u32 %v802, 7
    %v804 = vsub.s32 0, %v803
    %v805 = vrot.slane %v800, %v804
    %v823 = vunpack.c.l.b16 %v783
    %v824 = vunpack.c.l.b16 %v784
    %v825 = vunpack.c.l.b16 %v785
    %v826 = vunpack.c.l.b16 %v786
    %v827 = vunpack.c.l.b16 %v787
    %v828 = vunpack.c.l.b16 %v788
    %v829 = vunpack.c.l.b16 %v789
    %v830 = vunpack.c.l.b16 %v790
    %v831 = vunpack.c.l.b16 %v791
    %v832 = vunpack.c.l.b16 %v792
    %v833 = vunpack.c.l.b16 %v793
    %v834 = vunpack.c.l.b16 %v794
    %v835 = vunpack.c.l.b16 %v795
    %v836 = vunpack.c.l.b16 %v796
    %v837 = vunpack.c.l.b16 %v797
    %v838 = vunpack.c.l.b16 %v798
    %v839 = vpack.c.b16 %v824, %v823
    %v840 = vpack.c.b16 %v826, %v825
    %v841 = vpack.c.b16 %v828, %v827
    %v842 = vpack.c.b16 %v830, %v829
    %v843 = vpack.c.b16 %v832, %v831
    %v844 = vpack.c.b16 %v834, %v833
    %v845 = vpack.c.b16 %v836, %v835
    %v846 = vpack.c.b16 %v838, %v837
    %855 = vmatprep.subr.bf16.mxu0 0
    %856 = vmatpush1.bf16.msra.mxu0 %v846
    %857 = vmatprep.subr.bf16.mxu0 0
    %858 = vmatpush1.bf16.msra.mxu0 %v845
    %859 = vmatprep.subr.bf16.mxu0 0
    %860 = vmatpush1.bf16.msra.mxu0 %v844
    %861 = vmatprep.subr.bf16.mxu0 0
    %862 = vmatpush1.bf16.msra.mxu0 %v843
    %863 = vmatprep.subr.bf16.mxu0 0
    %864 = vmatpush1.bf16.msra.mxu0 %v842
    %865 = vmatprep.subr.bf16.mxu0 0
    %866 = vmatpush1.bf16.msra.mxu0 %v841
    %867 = vmatprep.subr.bf16.mxu0 0
    %868 = vmatpush1.bf16.msra.mxu0 %v840
    %869 = vmatprep.subr.bf16.mxu0 0
    %870 = vmatpush1.bf16.msra.mxu0 %v839
    %871 = vmatprep.subr.bf16.mxu0 0
    %872 = vmatpush2.bf16.msra.mxu0 0
    %873 = vmatprep.subr.bf16.mxu0 0
    %874 = vmatpush2.bf16.msra.mxu0 0
    %875 = vmatprep.subr.bf16.mxu0 0
    %876 = vmatpush2.bf16.msra.mxu0 0
    %877 = vmatprep.subr.bf16.mxu0 0
    %878 = vmatpush2.bf16.msra.mxu0 0
    %879 = vmatprep.subr.bf16.mxu0 0
    %880 = vmatpush2.bf16.msra.mxu0 0
    %881 = vmatprep.subr.bf16.mxu0 0
    %882 = vmatpush2.bf16.msra.mxu0 0
    %883 = vmatprep.subr.bf16.mxu0 0
    %884 = vmatpush2.bf16.msra.mxu0 0
    %885 = vmatprep.subr.bf16.mxu0 0
    %886 = vmatpush2.bf16.msra.mxu0 0
    %887 = vmatprep.mubr.bf16.mxu0 0
    %888 = vmatmul.mubr.bf16.gmra.mxu0 %v781
    %v889 = vpop.f32.mrf.mxu0
    %v890 = vadd.f32 %v805, %v889
    %v891 = vpop.f32.mrf.mxu0
    %v892 = vpop.f32.mrf.mxu0
    %v893 = vpop.f32.mrf.mxu0
    %894 = vdwg.mxu0
    %v895 = vpack.c.bf16 %v890, %v890
    %896 = vst [vmem:[%s3] sm:$0xf] %v895
    // Predicated region
    $region18: #{deep_model_forward.1} parent=1 // pred_check
      _
    $region19: #{deep_model_forward.1} parent=1 // pred_check_branch
      %898 = sbr.rel (0) target = $region21
    $region20: #{deep_model_forward.1} parent=1 // pred_region
      _
    $region21: #{deep_model_forward.1} parent=1 // pred_fallthru
      _
    // Predicated region
    $region22: #{deep_model_forward.1} parent=1 // pred_check
      _
    $region23: #{deep_model_forward.1} parent=1 // pred_check_branch
      %900 = sbr.rel (0) target = $region25
    $region24: #{deep_model_forward.1} parent=1 // pred_region
      _
    $region25: #{deep_model_forward.1} parent=1 // pred_fallthru
      _
    %901 = vsyncpa [#allocation3], 1

</llo_original>
